<compile_context>
chip_gen: v6e
topology: v6e:2x2x1
jax: 0.10.0
libtpu: 0.0.40
codegen_flags: <defaults>
</compile_context>

<pallas_src>
import numpy as np

import jax
import jax.numpy as jnp
from jax.experimental import pallas as pl
from jax.experimental.pallas import tpu as pltpu


# --------------------------------------------------------------------------
# Fused CBAM kernel (TB batch images per grid step, pixels on the lane axis)
# --------------------------------------------------------------------------
def _cbam_kernel(x_ref, w1_ref, w2_ref, ws_ref, o_ref):
    # x_ref : (TB, C, HW)   feature-map block (NCHW with spatial flattened)
    # w1_ref: (C, Cr)       SE fc1 weight (= Linear.weight.T, no bias)
    # w2_ref: (Cr, C)       SE fc2 weight (= Linear.weight.T, no bias)
    # ws_ref: (2, HW, HW)   dense 7x7 conv matrices for the [avg, max] inputs
    #                       (SAME zero padding already folded in)
    # o_ref : (TB, C, HW)   gated output
    x = x_ref[...].astype(jnp.float32)                                # (TB, C, HW)

    # ---- SE channel attention: squeeze -> FC/ReLU -> FC/sigmoid -> scale ---
    y = jnp.mean(x, axis=-1)                                          # (TB, C)
    h = jnp.maximum(
        jnp.dot(y, w1_ref[...], preferred_element_type=jnp.float32), 0.0)
    s = jax.nn.sigmoid(
        jnp.dot(h, w2_ref[...], preferred_element_type=jnp.float32))  # (TB, C)
    xse = x * s[:, :, None]                                           # (TB, C, HW)

    # ---- spatial attention: channel mean/max -> 7x7 conv -> sigmoid -> gate
    avg = jnp.mean(xse, axis=1)                                       # (TB, HW)
    mx = jnp.max(xse, axis=1)                                         # (TB, HW)
    conv = (jnp.dot(avg, ws_ref[0], preferred_element_type=jnp.float32) +
            jnp.dot(mx, ws_ref[1], preferred_element_type=jnp.float32))
    attn = jax.nn.sigmoid(conv)                                       # (TB, HW)

    o_ref[...] = (xse * attn[:, None, :]).astype(o_ref.dtype)


# --------------------------------------------------------------------------
# Wrapper
# --------------------------------------------------------------------------
def _conv_matrices(w_spatial, H, W):
    """Fold the (7, 7, 2) spatial-conv weights (+ SAME zero padding) into two
    dense (HW, HW) matrices so that

        conv_flat = avg_flat @ K[0] + max_flat @ K[1]

    reproduces Conv2d(2, 1, kernel_size=7, padding=3, bias=False) on the
    row-major flattened (H, W) maps."""
    w = np.asarray(w_spatial, dtype=np.float32)                       # (7, 7, 2)
    HW = H * W
    K = np.zeros((2, HW, HW), np.float32)
    hq, wq = np.meshgrid(np.arange(H), np.arange(W), indexing="ij")   # (H, W)
    q = (hq * W + wq).ravel()
    for dy in range(7):
        for dx in range(7):
            hp = hq + dy - 3
            wp = wq + dx - 3
            valid = ((hp >= 0) & (hp < H) & (wp >= 0) & (wp < W)).ravel()
            p = (np.clip(hp, 0, H - 1) * W + np.clip(wp, 0, W - 1)).ravel()
            K[0, p[valid], q[valid]] += w[dy, dx, 0]                  # avg channel
            K[1, p[valid], q[valid]] += w[dy, dx, 1]                  # max channel
    return jnp.asarray(K)


def cbam_forward(x_nchw, params, *, batch_block=32):
    B, C, H, W = x_nchw.shape
    HW = H * W
    Cr = params["se_w1"].shape[-1]

    # Largest divisor of B not exceeding batch_block -> TB images per grid step.
    TB = min(B, batch_block)
    while B % TB:
        TB -= 1

    x = x_nchw.reshape(B, C, HW)                      # pixels -> lane axis
    ws = _conv_matrices(params["spatial_w"], H, W)    # (2, HW, HW)

    out = pl.pallas_call(
        _cbam_kernel,
        out_shape=jax.ShapeDtypeStruct((B, C, HW), x.dtype),
        grid=(B // TB,),
        in_specs=[
            pl.BlockSpec((TB, C, HW), lambda b: (b, 0, 0)),
            pl.BlockSpec((C, Cr), lambda b: (0, 0)),
            pl.BlockSpec((Cr, C), lambda b: (0, 0)),
            pl.BlockSpec((2, HW, HW), lambda b: (0, 0, 0)),
        ],
        out_specs=pl.BlockSpec((TB, C, HW), lambda b: (b, 0, 0)),
        compiler_params=pltpu.CompilerParams(
            dimension_semantics=("parallel",)),
    )(x, params["se_w1"], params["se_w2"], ws)
    return out.reshape(B, C, H, W)                    # back to NCHW


# --------------------------------------------------------------------------
# Pure-JAX reference (mirrors the PyTorch CBAMBlock forward, NCHW)
# --------------------------------------------------------------------------
def ref_forward(x_nchw, params):
    y = jnp.mean(x_nchw, axis=(2, 3))                                 # (B, C)
    s = jax.nn.sigmoid(jnp.maximum(y @ params["se_w1"], 0.0) @ params["se_w2"])
    xs = x_nchw * s[:, :, None, None]                                 # SE scale
    avg = jnp.mean(xs, axis=1, keepdims=True)
    mx = jnp.max(xs, axis=1, keepdims=True)
    attn_in = jnp.concatenate([avg, mx], axis=1)                      # (B, 2, H, W)
    w_oihw = jnp.transpose(params["spatial_w"], (2, 0, 1))[None]      # (1, 2, 7, 7)
    attn = jax.lax.conv_general_dilated(
        attn_in, w_oihw, (1, 1), "SAME",
        dimension_numbers=("NCHW", "OIHW", "NCHW"))
    return xs * jax.nn.sigmoid(attn)


def init_params(key, channels, reduction=16):
    cr = max(channels // reduction, 1)
    k1, k2, k3 = jax.random.split(key, 3)
    # SE MLP stored transposed so the kernel computes y @ W (== nn.Linear, bias=False)
    se_w1 = 0.2 * jax.random.normal(k1, (channels, cr), jnp.float32)
    se_w2 = 0.2 * jax.random.normal(k2, (cr, channels), jnp.float32)
    # spatial conv: (dy, dx, in-channel={avg, max}), bias=False as in the module
    spatial_w = 0.1 * jax.random.normal(k3, (7, 7, 2), jnp.float32)
    return dict(se_w1=se_w1, se_w2=se_w2, spatial_w=spatial_w)


if __name__ == "__main__":
    key = jax.random.PRNGKey(0)
    kx, kp = jax.random.split(key)

    B, C, H, W = 2, 32, 16, 16          # reduction=16 -> SE hidden dim = 2
    x = jax.random.normal(kx, (B, C, H, W), jnp.float32)   # PyTorch-style NCHW
    params = init_params(kp, C, reduction=16)

    out = cbam_forward(x, params)
    out = jax.block_until_ready(out)
    assert out.shape == (B, C, H, W), out.shape

    ref = ref_forward(x, params)
    err = float(jnp.max(jnp.abs(out - ref)))
    assert err < 1e-4, f"max abs error vs reference: {err}"

    print("KERNEL_OK")
</pallas_src>

<mosaic_0001>
module attributes {stable_mosaic.version = 11 : i64} {
  func.func @_cbam_kernel(%arg0: i32, %arg1: memref<2x32x256xf32, #tpu.memory_space<vmem>>, %arg2: memref<32x2xf32, #tpu.memory_space<vmem>>, %arg3: memref<2x32xf32, #tpu.memory_space<vmem>>, %arg4: memref<2x256x256xf32, #tpu.memory_space<vmem>>, %arg5: memref<2x32x256xf32, #tpu.memory_space<vmem>>) attributes {dimension_semantics = [#tpu.dimension_semantics<parallel>], iteration_bounds = array<i64: 1>, scalar_prefetch = 0 : i64, scratch_operands = 0 : i64, tpu.core_type = #tpu.core_type<tc>, window_params = [{transform_indices = @transform_0, window_bounds = array<i64: 2, 32, 256>}, {pipeline_mode = #tpu.pipeline_mode<synchronous>, transform_indices = @transform_1, window_bounds = array<i64: 32, 2>}, {pipeline_mode = #tpu.pipeline_mode<synchronous>, transform_indices = @transform_2, window_bounds = array<i64: 2, 32>}, {pipeline_mode = #tpu.pipeline_mode<synchronous>, transform_indices = @transform_3, window_bounds = array<i64: 2, 256, 256>}, {transform_indices = @transform_4, window_bounds = array<i64: 2, 32, 256>}]} {
    %c0 = arith.constant 0 : index
    %c0_0 = arith.constant 0 : index
    %c0_1 = arith.constant 0 : index
    %0 = vector.load %arg1[%c0, %c0_0, %c0_1] : memref<2x32x256xf32, #tpu.memory_space<vmem>>, vector<2x32x256xf32>
    %cst = arith.constant dense<0.000000e+00> : vector<2x32xf32>
    %1 = vector.multi_reduction <add>, %0, %cst [2] : vector<2x32x256xf32> to vector<2x32xf32>
    %cst_2 = arith.constant 2.560000e+02 : f32
    %2 = vector.broadcast %cst_2 : f32 to vector<2x32xf32>
    %3 = arith.divf %1, %2 : vector<2x32xf32>
    %c0_3 = arith.constant 0 : index
    %c0_4 = arith.constant 0 : index
    %4 = vector.load %arg2[%c0_3, %c0_4] : memref<32x2xf32, #tpu.memory_space<vmem>>, vector<32x2xf32>
    %cst_5 = arith.constant dense<0.000000e+00> : vector<2x2xf32>
    %5 = tpu.matmul %3, %4, %cst_5 {dimension_numbers = #tpu.dot_dimension_numbers<[1], [0], [0], [1], [0, 0, 1, 1], [], []>} : vector<2x32xf32>, vector<32x2xf32>, vector<2x2xf32> -> vector<2x2xf32>
    %cst_6 = arith.constant 0.000000e+00 : f32
    %6 = vector.broadcast %cst_6 : f32 to vector<2x2xf32>
    %7 = arith.maximumf %5, %6 : vector<2x2xf32>
    %c0_7 = arith.constant 0 : index
    %c0_8 = arith.constant 0 : index
    %8 = vector.load %arg3[%c0_7, %c0_8] : memref<2x32xf32, #tpu.memory_space<vmem>>, vector<2x32xf32>
    %cst_9 = arith.constant dense<0.000000e+00> : vector<2x32xf32>
    %9 = tpu.matmul %7, %8, %cst_9 {dimension_numbers = #tpu.dot_dimension_numbers<[1], [0], [0], [1], [0, 0, 1, 1], [], []>} : vector<2x2xf32>, vector<2x32xf32>, vector<2x32xf32> -> vector<2x32xf32>
    %10 = arith.negf %9 : vector<2x32xf32>
    %11 = math.exp %10 : vector<2x32xf32>
    %cst_10 = arith.constant 1.000000e+00 : f32
    %12 = vector.broadcast %cst_10 : f32 to vector<2x32xf32>
    %13 = arith.addf %12, %11 : vector<2x32xf32>
    %14 = arith.divf %12, %13 : vector<2x32xf32>
    %15 = vector.shape_cast %14 : vector<2x32xf32> to vector<2x32x1xf32>
    %16 = vector.broadcast %15 : vector<2x32x1xf32> to vector<2x32x256xf32>
    %17 = arith.mulf %0, %16 : vector<2x32x256xf32>
    %cst_11 = arith.constant dense<0.000000e+00> : vector<2x256xf32>
    %18 = vector.multi_reduction <add>, %17, %cst_11 [1] : vector<2x32x256xf32> to vector<2x256xf32>
    %cst_12 = arith.constant 3.200000e+01 : f32
    %19 = vector.broadcast %cst_12 : f32 to vector<2x256xf32>
    %20 = arith.divf %18, %19 : vector<2x256xf32>
    %cst_13 = arith.constant dense<0xFF800000> : vector<2x256xf32>
    %21 = vector.multi_reduction <maximumf>, %17, %cst_13 [1] : vector<2x32x256xf32> to vector<2x256xf32>
    %c0_14 = arith.constant 0 : index
    %c0_15 = arith.constant 0 : index
    %c0_16 = arith.constant 0 : index
    %22 = vector.load %arg4[%c0_14, %c0_15, %c0_16] : memref<2x256x256xf32, #tpu.memory_space<vmem>>, vector<1x256x256xf32>
    %23 = vector.shape_cast %22 : vector<1x256x256xf32> to vector<256x256xf32>
    %cst_17 = arith.constant dense<0.000000e+00> : vector<2x256xf32>
    %24 = tpu.matmul %20, %23, %cst_17 {dimension_numbers = #tpu.dot_dimension_numbers<[1], [0], [0], [1], [0, 0, 1, 1], [], []>} : vector<2x256xf32>, vector<256x256xf32>, vector<2x256xf32> -> vector<2x256xf32>
    %c1 = arith.constant 1 : index
    %c0_18 = arith.constant 0 : index
    %c0_19 = arith.constant 0 : index
    %25 = vector.load %arg4[%c1, %c0_18, %c0_19] : memref<2x256x256xf32, #tpu.memory_space<vmem>>, vector<1x256x256xf32>
    %26 = vector.shape_cast %25 : vector<1x256x256xf32> to vector<256x256xf32>
    %cst_20 = arith.constant dense<0.000000e+00> : vector<2x256xf32>
    %27 = tpu.matmul %21, %26, %cst_20 {dimension_numbers = #tpu.dot_dimension_numbers<[1], [0], [0], [1], [0, 0, 1, 1], [], []>} : vector<2x256xf32>, vector<256x256xf32>, vector<2x256xf32> -> vector<2x256xf32>
    %28 = arith.addf %24, %27 : vector<2x256xf32>
    %29 = arith.negf %28 : vector<2x256xf32>
    %30 = math.exp %29 : vector<2x256xf32>
    %cst_21 = arith.constant 1.000000e+00 : f32
    %31 = vector.broadcast %cst_21 : f32 to vector<2x256xf32>
    %32 = arith.addf %31, %30 : vector<2x256xf32>
    %33 = arith.divf %31, %32 : vector<2x256xf32>
    %34 = vector.shape_cast %33 : vector<2x256xf32> to vector<2x1x256xf32>
    %35 = vector.broadcast %34 : vector<2x1x256xf32> to vector<2x32x256xf32>
    %36 = arith.mulf %17, %35 : vector<2x32x256xf32>
    %c0_22 = arith.constant 0 : index
    %c0_23 = arith.constant 0 : index
    %c0_24 = arith.constant 0 : index
    %37 = vector.load %arg5[%c0_22, %c0_23, %c0_24] : memref<2x32x256xf32, #tpu.memory_space<vmem>>, vector<2x32x256xf32>
    tpu.vector_store %arg5[%c0_22, %c0_23, %c0_24], %36 {strides = array<i32>} : memref<2x32x256xf32, #tpu.memory_space<vmem>>, vector<2x32x256xf32>,
    return
  }
  func.func @transform_0(%arg0: i32) -> (i32, i32, i32) {
    %c0_i32 = arith.constant 0 : i32
    %c0_i32_0 = arith.constant 0 : i32
    %c0_i32_1 = arith.constant 0 : i32
    return %arg0, %c0_i32, %c0_i32_0 : i32, i32, i32
  }
  func.func @transform_1(%arg0: i32) -> (i32, i32) {
    %c0_i32 = arith.constant 0 : i32
    %c0_i32_0 = arith.constant 0 : i32
    %c0_i32_1 = arith.constant 0 : i32
    return %c0_i32, %c0_i32_0 : i32, i32
  }
  func.func @transform_2(%arg0: i32) -> (i32, i32) {
    %c0_i32 = arith.constant 0 : i32
    %c0_i32_0 = arith.constant 0 : i32
    %c0_i32_1 = arith.constant 0 : i32
    return %c0_i32, %c0_i32_0 : i32, i32
  }
  func.func @transform_3(%arg0: i32) -> (i32, i32, i32) {
    %c0_i32 = arith.constant 0 : i32
    %c0_i32_0 = arith.constant 0 : i32
    %c0_i32_1 = arith.constant 0 : i32
    %c0_i32_2 = arith.constant 0 : i32
    return %c0_i32, %c0_i32_0, %c0_i32_1 : i32, i32, i32
  }
  func.func @transform_4(%arg0: i32) -> (i32, i32, i32) {
    %c0_i32 = arith.constant 0 : i32
    %c0_i32_0 = arith.constant 0 : i32
    %c0_i32_1 = arith.constant 0 : i32
    return %arg0, %c0_i32, %c0_i32_0 : i32, i32, i32
  }
}

</mosaic_0001>

<llo_original>
// kernel: tpu_custom_call.1
$region0: #{tpu_custom_call.1}
  #allocation0 [shape = 'u32[]', space=smem, size = 0x4, offset = 0x4, fixed_abs, tag = 'smem constant byte address 0x4 - core index']
  #allocation1 [shape = 'u32[144,128]{1,0:T(1,128)}', space=vmem, size = 0x12000, scoped, tag = 'internal scratch']
  %s0 = inlined_call_operand.hbm [shape: f32[2,32,256], index: 0, kind: input, shape index: {}]
  %s1 = inlined_call_operand.vmem [shape: f32[32,2], index: 1, kind: input, shape index: {}]
  %s2 = inlined_call_operand.vmem [shape: f32[2,32], index: 2, kind: input, shape index: {}]
  %s3 = inlined_call_operand.hbm [shape: f32[2,256,256], index: 3, kind: input, shape index: {}]
  %s4 = inlined_call_operand.hbm [shape: f32[2,32,256], index: 4, kind: output, shape index: {}]
  %s5 = sld [smem:[#allocation0]]
  $region34: #{tpu_custom_call.1} parent=0
    _
  %s7 = ssub.s32 1, %s5
  %s8 = scalar_select 0, %s7, %s5
  $region1: #{tpu_custom_call.1} parent=0
    #allocation2 [shape = 'u8[65536]{0}', space=vmem, size = 0x10000, scoped, tag = 'input window, operand 0, single buffered']
    #allocation3 [shape = 's32[1]{0}', space=sflag, size = 0x4, scoped, tag = 'scoped memory for tpu_custom_call.1']
    #allocation4 [shape = 's32[1]{0}', space=sflag, size = 0x4, scoped, tag = 'scoped memory for tpu_custom_call.1']
    #allocation5 [shape = 'u8[524288]{0}', space=vmem, size = 0x80000, scoped, tag = 'input window, operand 3, single buffered']
    #allocation6 [shape = 's32[1]{0}', space=sflag, size = 0x4, scoped, tag = 'scoped memory for tpu_custom_call.1']
    #allocation7 [shape = 'u8[65536]{0}', space=vmem, size = 0x10000, scoped, tag = 'output window, operand 0, single buffered']
    %9 = vsyncpa [#allocation3], 0
    %10 = vsyncpa [#allocation6], 0
    %11 = vsyncpa [#allocation4], 0
    // Predicated region
    $region2: #{tpu_custom_call.1} parent=1 // pred_check
      _
    $region3: #{tpu_custom_call.1} parent=1 // pred_check_branch
      %13 = sbr.rel (0) target = $region5
    $region4: #{tpu_custom_call.1} parent=1 // pred_region
      %s15 = ssub.s32 2048, 2048
      %16 = vsyncadd [#allocation3], %s15
      %s17 = sshll.u32 [#allocation2], 4
      %s18 = int_to_ptr.vmem [resolvable:$true] %s17
      %23 = dma.hbm_to_vmem [thread:$0]  %s0, 2048, %s18, [#allocation3], 256, 256, 16
    $region5: #{tpu_custom_call.1} parent=1 // pred_fallthru
      _
    // Predicated region
    $region6: #{tpu_custom_call.1} parent=1 // pred_check
      _
    $region7: #{tpu_custom_call.1} parent=1 // pred_check_branch
      %25 = sbr.rel (0) target = $region9
    $region8: #{tpu_custom_call.1} parent=1 // pred_region
      _
    $region9: #{tpu_custom_call.1} parent=1 // pred_fallthru
      _
    // Predicated region
    $region10: #{tpu_custom_call.1} parent=1 // pred_check
      _
    $region11: #{tpu_custom_call.1} parent=1 // pred_check_branch
      %27 = sbr.rel (0) target = $region13
    $region12: #{tpu_custom_call.1} parent=1 // pred_region
      _
    $region13: #{tpu_custom_call.1} parent=1 // pred_fallthru
      _
    // Predicated region
    $region14: #{tpu_custom_call.1} parent=1 // pred_check
      _
    $region15: #{tpu_custom_call.1} parent=1 // pred_check_branch
      %29 = sbr.rel (0) target = $region17
    $region16: #{tpu_custom_call.1} parent=1 // pred_region
      %s31 = ssub.s32 16384, 16384
      %32 = vsyncadd [#allocation6], %s31
      %s33 = sshll.u32 [#allocation5], 4
      %s34 = int_to_ptr.vmem [resolvable:$true] %s33
      %39 = dma.hbm_to_vmem [thread:$0]  %s3, 16384, %s34, [#allocation6], 256, 256, 16
    $region17: #{tpu_custom_call.1} parent=1 // pred_fallthru
      _
    // Predicated region
    $region18: #{tpu_custom_call.1} parent=1 // pred_check
      _
    $region19: #{tpu_custom_call.1} parent=1 // pred_check_branch
      %41 = sbr.rel (0) target = $region21
    $region20: #{tpu_custom_call.1} parent=1 // pred_region
      %42 = dma.done [#allocation3], 2048
    $region21: #{tpu_custom_call.1} parent=1 // pred_fallthru
      _
    // Predicated region
    $region22: #{tpu_custom_call.1} parent=1 // pred_check
      _
    $region23: #{tpu_custom_call.1} parent=1 // pred_check_branch
      %44 = sbr.rel (0) target = $region25
    $region24: #{tpu_custom_call.1} parent=1 // pred_region
      %45 = dma.done [#allocation6], 16384
    $region25: #{tpu_custom_call.1} parent=1 // pred_fallthru
      _
    %v46 = vld [vmem:[#allocation2] sm:$0xff]
    %v47 = vld [vmem:[#allocation2 + $0x8] sm:$0xff]
    %v48 = vld [vmem:[#allocation2 + $0x10] sm:$0xff]
    %v49 = vld [vmem:[#allocation2 + $0x18] sm:$0xff]
    %v50 = vld [vmem:[#allocation2 + $0x20] sm:$0xff]
    %v51 = vld [vmem:[#allocation2 + $0x28] sm:$0xff]
    %v52 = vld [vmem:[#allocation2 + $0x30] sm:$0xff]
    %v53 = vld [vmem:[#allocation2 + $0x38] sm:$0xff]
    %v54 = vld [vmem:[#allocation2 + $0x40] sm:$0xff]
    %v55 = vld [vmem:[#allocation2 + $0x48] sm:$0xff]
    %v56 = vld [vmem:[#allocation2 + $0x50] sm:$0xff]
    %v57 = vld [vmem:[#allocation2 + $0x58] sm:$0xff]
    %v58 = vld [vmem:[#allocation2 + $0x60] sm:$0xff]
    %v59 = vld [vmem:[#allocation2 + $0x68] sm:$0xff]
    %v60 = vld [vmem:[#allocation2 + $0x70] sm:$0xff]
    %v61 = vld [vmem:[#allocation2 + $0x78] sm:$0xff]
    %v62 = vadd.f32 %v46, %v47
    %63 = vadd.xlane.f32.xlu0 %v62
    %v64 = vpop.xlane.xlu0 %63
    %v65 = vadd.f32 %v48, %v49
    %66 = vadd.xlane.f32.xlu0 %v65
    %v67 = vpop.xlane.xlu0 %66
    %v68 = vadd.f32 %v50, %v51
    %69 = vadd.xlane.f32.xlu0 %v68
    %v70 = vpop.xlane.xlu0 %69
    %v71 = vadd.f32 %v52, %v53
    %72 = vadd.xlane.f32.xlu0 %v71
    %v73 = vpop.xlane.xlu0 %72
    %v74 = vadd.f32 %v54, %v55
    %75 = vadd.xlane.f32.xlu0 %v74
    %v76 = vpop.xlane.xlu0 %75
    %v77 = vadd.f32 %v56, %v57
    %78 = vadd.xlane.f32.xlu0 %v77
    %v79 = vpop.xlane.xlu0 %78
    %v80 = vadd.f32 %v58, %v59
    %81 = vadd.xlane.f32.xlu0 %v80
    %v82 = vpop.xlane.xlu0 %81
    %v83 = vadd.f32 %v60, %v61
    %84 = vadd.xlane.f32.xlu0 %v83
    %v85 = vpop.xlane.xlu0 %84
    %v86 = vrcp.pop 256.0
    %v87 = vmul.f32 %v64, %v86
    %v88 = vmul.f32 %v67, %v86
    %v89 = vmul.f32 %v70, %v86
    %v90 = vmul.f32 %v73, %v86
    %v91 = vmul.f32 %v76, %v86
    %v92 = vmul.f32 %v79, %v86
    %v93 = vmul.f32 %v82, %v86
    %v94 = vmul.f32 %v85, %v86
    %v95 = vld [vmem:[%s1] sm:$0xff]
    %v96 = vld [vmem:[%s1 + $0x8] sm:$0xff]
    %v97 = vld [vmem:[%s1 + $0x10] sm:$0xff]
    %v98 = vld [vmem:[%s1 + $0x18] sm:$0xff]
    %v107 = vlaneseq
    %v108 = vand.u32 %v107, 127
    %v109 = vlaneseq
    %v110 = vshrl.u32 %v109, 7
    %v111 = vsub.s32 %v108, %v110
    %v112 = vrot.slane %v87, %v111
    %v113 = vadd.s32 %v108, 4294967288
    %v114 = vlaneseq
    %v115 = vshrl.u32 %v114, 7
    %v116 = vsub.s32 %v113, %v115
    %v117 = vrot.slane %v88, %v116
    %vm118 = vcmask 130112
    %v119 = vsel %vm118, %v117, %v112
    %v120 = vadd.s32 %v108, 4294967280
    %v121 = vlaneseq
    %v122 = vshrl.u32 %v121, 7
    %v123 = vsub.s32 %v120, %v122
    %v124 = vrot.slane %v89, %v123
    %vm125 = vcmask 195712
    %v126 = vsel %vm125, %v124, %v119
    %v127 = vadd.s32 %v108, 4294967272
    %v128 = vlaneseq
    %v129 = vshrl.u32 %v128, 7
    %v130 = vsub.s32 %v127, %v129
    %v131 = vrot.slane %v90, %v130
    %vm132 = vcmask 261312
    %v133 = vsel %vm132, %v131, %v126
    %v134 = vlaneseq
    %v135 = vshrl.u32 %v134, 7
    %v136 = vsub.s32 %v108, %v135
    %v137 = vrot.slane %v91, %v136
    %v138 = vlaneseq
    %v139 = vshrl.u32 %v138, 7
    %v140 = vsub.s32 %v113, %v139
    %v141 = vrot.slane %v92, %v140
    %v142 = vsel %vm118, %v141, %v137
    %v143 = vlaneseq
    %v144 = vshrl.u32 %v143, 7
    %v145 = vsub.s32 %v120, %v144
    %v146 = vrot.slane %v93, %v145
    %v147 = vsel %vm125, %v146, %v142
    %v148 = vlaneseq
    %v149 = vshrl.u32 %v148, 7
    %v150 = vsub.s32 %v127, %v149
    %v151 = vrot.slane %v94, %v150
    %v152 = vsel %vm132, %v151, %v147
    %vm153 = vcmask 1041409
    %v154 = vsel %vm153, %v152, %v133
    %vm155 = vcmask 261120
    %v156 = vsel %vm155, %v154, 0
    %158 = vmatprep.subr.mxu0 0.0
    %159 = vmatpush1.msra.mxu0 0.0
    %160 = vmatprep.subr.mxu0 0.0
    %161 = vmatpush1.msra.mxu0 0.0
    %162 = vmatprep.subr.mxu0 0.0
    %163 = vmatpush1.msra.mxu0 0.0
    %164 = vmatprep.subr.mxu0 0.0
    %165 = vmatpush1.msra.mxu0 0.0
    %166 = vmatprep.subr.mxu0 0.0
    %167 = vmatpush1.msra.mxu0 0.0
    %168 = vmatprep.subr.mxu0 0.0
    %169 = vmatpush1.msra.mxu0 0.0
    %170 = vmatprep.subr.mxu0 0.0
    %171 = vmatpush1.msra.mxu0 0.0
    %172 = vmatprep.subr.mxu0 0.0
    %173 = vmatpush1.msra.mxu0 0.0
    %174 = vmatprep.subr.mxu0 0.0
    %175 = vmatpush1.msra.mxu0 0.0
    %176 = vmatprep.subr.mxu0 0.0
    %177 = vmatpush1.msra.mxu0 0.0
    %178 = vmatprep.subr.mxu0 0.0
    %179 = vmatpush1.msra.mxu0 0.0
    %180 = vmatprep.subr.mxu0 0.0
    %181 = vmatpush1.msra.mxu0 0.0
    %182 = vmatprep.subr.mxu0 0.0
    %183 = vmatpush1.msra.mxu0 %v98
    %184 = vmatprep.subr.mxu0 0.0
    %185 = vmatpush1.msra.mxu0 %v97
    %186 = vmatprep.subr.mxu0 0.0
    %187 = vmatpush1.msra.mxu0 %v96
    %188 = vmatprep.subr.mxu0 0.0
    %189 = vmatpush1.msra.mxu0 %v95
    %190 = vmatprep.subr.mxu0 0.0
    %191 = vmatpush2.msra.mxu0 0.0
    %192 = vmatprep.subr.mxu0 0.0
    %193 = vmatpush2.msra.mxu0 0.0
    %194 = vmatprep.subr.mxu0 0.0
    %195 = vmatpush2.msra.mxu0 0.0
    %196 = vmatprep.subr.mxu0 0.0
    %197 = vmatpush2.msra.mxu0 0.0
    %198 = vmatprep.subr.mxu0 0.0
    %199 = vmatpush2.msra.mxu0 0.0
    %200 = vmatprep.subr.mxu0 0.0
    %201 = vmatpush2.msra.mxu0 0.0
    %202 = vmatprep.subr.mxu0 0.0
    %203 = vmatpush2.msra.mxu0 0.0
    %204 = vmatprep.subr.mxu0 0.0
    %205 = vmatpush2.msra.mxu0 0.0
    %206 = vmatprep.subr.mxu0 0.0
    %207 = vmatpush2.msra.mxu0 0.0
    %208 = vmatprep.subr.mxu0 0.0
    %209 = vmatpush2.msra.mxu0 0.0
    %210 = vmatprep.subr.mxu0 0.0
    %211 = vmatpush2.msra.mxu0 0.0
    %212 = vmatprep.subr.mxu0 0.0
    %213 = vmatpush2.msra.mxu0 0.0
    %214 = vmatprep.subr.mxu0 0.0
    %215 = vmatpush2.msra.mxu0 0.0
    %216 = vmatprep.subr.mxu0 0.0
    %217 = vmatpush2.msra.mxu0 0.0
    %218 = vmatprep.subr.mxu0 0.0
    %219 = vmatpush2.msra.mxu0 0.0
    %220 = vmatprep.subr.mxu0 0.0
    %221 = vmatpush2.msra.mxu0 0.0
    %222 = vmatprep.mubr.f32.mxu0 0.0
    %223 = vmatmul.mubr.f32.gmra.mxu0 %v156
    %v224 = vpop.f32.mrf.mxu0
    %v225 = vadd.f32 0.0, %v224
    %v226 = vpop.f32.mrf.mxu0
    %227 = vdwg.mxu0
    %v228 = vmax.f32 %v225, 0.0
    %v229 = vld [vmem:[%s2] sm:$0x3]
    %vm230 = vcmask 15360
    %v232 = vsel %vm230, %v228, 0
    %vm234 = vcmask 1041408
    %v236 = vsel %vm234, %v229, 0
    %238 = vmatprep.subr.mxu0 0.0
    %239 = vmatpush1.msra.mxu0 0.0
    %240 = vmatprep.subr.mxu0 0.0
    %241 = vmatpush1.msra.mxu0 0.0
    %242 = vmatprep.subr.mxu0 0.0
    %243 = vmatpush1.msra.mxu0 0.0
    %244 = vmatprep.subr.mxu0 0.0
    %245 = vmatpush1.msra.mxu0 0.0
    %246 = vmatprep.subr.mxu0 0.0
    %247 = vmatpush1.msra.mxu0 0.0
    %248 = vmatprep.subr.mxu0 0.0
    %249 = vmatpush1.msra.mxu0 0.0
    %250 = vmatprep.subr.mxu0 0.0
    %251 = vmatpush1.msra.mxu0 0.0
    %252 = vmatprep.subr.mxu0 0.0
    %253 = vmatpush1.msra.mxu0 0.0
    %254 = vmatprep.subr.mxu0 0.0
    %255 = vmatpush1.msra.mxu0 0.0
    %256 = vmatprep.subr.mxu0 0.0
    %257 = vmatpush1.msra.mxu0 0.0
    %258 = vmatprep.subr.mxu0 0.0
    %259 = vmatpush1.msra.mxu0 0.0
    %260 = vmatprep.subr.mxu0 0.0
    %261 = vmatpush1.msra.mxu0 0.0
    %262 = vmatprep.subr.mxu0 0.0
    %263 = vmatpush1.msra.mxu0 0.0
    %264 = vmatprep.subr.mxu0 0.0
    %265 = vmatpush1.msra.mxu0 0.0
    %266 = vmatprep.subr.mxu0 0.0
    %267 = vmatpush1.msra.mxu0 0.0
    %268 = vmatprep.subr.mxu0 0.0
    %269 = vmatpush1.msra.mxu0 %v236
    %270 = vmatprep.subr.mxu0 0.0
    %271 = vmatpush2.msra.mxu0 0.0
    %272 = vmatprep.subr.mxu0 0.0
    %273 = vmatpush2.msra.mxu0 0.0
    %274 = vmatprep.subr.mxu0 0.0
    %275 = vmatpush2.msra.mxu0 0.0
    %276 = vmatprep.subr.mxu0 0.0
    %277 = vmatpush2.msra.mxu0 0.0
    %278 = vmatprep.subr.mxu0 0.0
    %279 = vmatpush2.msra.mxu0 0.0
    %280 = vmatprep.subr.mxu0 0.0
    %281 = vmatpush2.msra.mxu0 0.0
    %282 = vmatprep.subr.mxu0 0.0
    %283 = vmatpush2.msra.mxu0 0.0
    %284 = vmatprep.subr.mxu0 0.0
    %285 = vmatpush2.msra.mxu0 0.0
    %286 = vmatprep.subr.mxu0 0.0
    %287 = vmatpush2.msra.mxu0 0.0
    %288 = vmatprep.subr.mxu0 0.0
    %289 = vmatpush2.msra.mxu0 0.0
    %290 = vmatprep.subr.mxu0 0.0
    %291 = vmatpush2.msra.mxu0 0.0
    %292 = vmatprep.subr.mxu0 0.0
    %293 = vmatpush2.msra.mxu0 0.0
    %294 = vmatprep.subr.mxu0 0.0
    %295 = vmatpush2.msra.mxu0 0.0
    %296 = vmatprep.subr.mxu0 0.0
    %297 = vmatpush2.msra.mxu0 0.0
    %298 = vmatprep.subr.mxu0 0.0
    %299 = vmatpush2.msra.mxu0 0.0
    %300 = vmatprep.subr.mxu0 0.0
    %301 = vmatpush2.msra.mxu0 0.0
    %302 = vmatprep.mubr.f32.mxu0 0.0
    %303 = vmatmul.mubr.f32.gmra.mxu0 %v232
    %v304 = vpop.f32.mrf.mxu0
    %v305 = vadd.f32 0.0, %v304
    %v306 = vpop.f32.mrf.mxu0
    %307 = vdwg.mxu0
    %v308 = vxor.u32 %v305, 2147483648
    %v309 = vmul.f32 %v308, 1.442695
    %v310 = vpow.pop %v309
    %v311 = vadd.f32 %v310, 1.0
    %v312 = vrcp.pop %v311
    %v313 = vmul.f32 1.0, %v312
    %v314 = vlaneseq
    %v315 = vshrl.u32 %v314, 7
    %v316 = vsub.s32 0, %v315
    %v317 = vrot.slane %v313, %v316
    %319 = vbcast.lane.b32.xlu0 %v317, 256
    %v320 = vpop.permute.xlu0 %319
    %s322 = sor.u32 256, 8
    %323 = vbcast.lane.b32.xlu0 %v317, %s322
    %v324 = vpop.permute.xlu0 %323
    %s326 = sor.u32 256, 16
    %327 = vbcast.lane.b32.xlu0 %v317, %s326
    %v328 = vpop.permute.xlu0 %327
    %s330 = sor.u32 256, 24
    %331 = vbcast.lane.b32.xlu0 %v317, %s330
    %v332 = vpop.permute.xlu0 %331
    %v333 = vlaneseq
    %v334 = vshrl.u32 %v333, 7
    %v335 = vsub.s32 1, %v334
    %v336 = vrot.slane %v313, %v335
    %338 = vbcast.lane.b32.xlu0 %v336, 256
    %v339 = vpop.permute.xlu0 %338
    %s341 = sor.u32 256, 8
    %342 = vbcast.lane.b32.xlu0 %v336, %s341
    %v343 = vpop.permute.xlu0 %342
    %s345 = sor.u32 256, 16
    %346 = vbcast.lane.b32.xlu0 %v336, %s345
    %v347 = vpop.permute.xlu0 %346
    %s349 = sor.u32 256, 24
    %350 = vbcast.lane.b32.xlu0 %v336, %s349
    %v351 = vpop.permute.xlu0 %350
    %v352 = vmul.f32 %v46, %v320
    %v353 = vmul.f32 %v47, %v320
    %v354 = vmul.f32 %v48, %v324
    %v355 = vmul.f32 %v49, %v324
    %v356 = vmul.f32 %v50, %v328
    %v357 = vmul.f32 %v51, %v328
    %v358 = vmul.f32 %v52, %v332
    %v359 = vmul.f32 %v53, %v332
    %v360 = vmul.f32 %v54, %v339
    %v361 = vmul.f32 %v55, %v339
    %v362 = vmul.f32 %v56, %v343
    %v363 = vmul.f32 %v57, %v343
    %v364 = vmul.f32 %v58, %v347
    %v365 = vmul.f32 %v59, %v347
    %v366 = vmul.f32 %v60, %v351
    %v367 = vmul.f32 %v61, %v351
    %v368 = vadd.f32 %v352, %v354
    %v369 = vadd.f32 %v368, %v356
    %v370 = vadd.f32 %v369, %v358
    %v371 = vrot.slane %v370, 4
    %v372 = vadd.f32 %v370, %v371
    %v373 = vrot.slane %v372, 2
    %v374 = vadd.f32 %v372, %v373
    %v375 = vrot.slane %v374, 1
    %v376 = vadd.f32 %v374, %v375
    %v377 = vadd.f32 %v353, %v355
    %v378 = vadd.f32 %v377, %v357
    %v379 = vadd.f32 %v378, %v359
    %v380 = vrot.slane %v379, 4
    %v381 = vadd.f32 %v379, %v380
    %v382 = vrot.slane %v381, 2
    %v383 = vadd.f32 %v381, %v382
    %v384 = vrot.slane %v383, 1
    %v385 = vadd.f32 %v383, %v384
    %v386 = vadd.f32 %v360, %v362
    %v387 = vadd.f32 %v386, %v364
    %v388 = vadd.f32 %v387, %v366
    %v389 = vrot.slane %v388, 4
    %v390 = vadd.f32 %v388, %v389
    %v391 = vrot.slane %v390, 2
    %v392 = vadd.f32 %v390, %v391
    %v393 = vrot.slane %v392, 1
    %v394 = vadd.f32 %v392, %v393
    %v395 = vadd.f32 %v361, %v363
    %v396 = vadd.f32 %v395, %v365
    %v397 = vadd.f32 %v396, %v367
    %v398 = vrot.slane %v397, 4
    %v399 = vadd.f32 %v397, %v398
    %v400 = vrot.slane %v399, 2
    %v401 = vadd.f32 %v399, %v400
    %v402 = vrot.slane %v401, 1
    %v403 = vadd.f32 %v401, %v402
    %v404 = vrcp.pop 32.0
    %v405 = vmul.f32 %v376, %v404
    %v406 = vmul.f32 %v385, %v404
    %v407 = vmul.f32 %v394, %v404
    %v408 = vmul.f32 %v403, %v404
    %v409 = vmax.f32 %v352, %v354
    %v410 = vmax.f32 %v409, %v356
    %v411 = vmax.f32 %v410, %v358
    %v412 = vrot.slane %v411, 4
    %v413 = vmax.f32 %v411, %v412
    %v414 = vrot.slane %v413, 2
    %v415 = vmax.f32 %v413, %v414
    %v416 = vrot.slane %v415, 1
    %v417 = vmax.f32 %v415, %v416
    %v418 = vmax.f32 %v353, %v355
    %v419 = vmax.f32 %v418, %v357
    %v420 = vmax.f32 %v419, %v359
    %v421 = vrot.slane %v420, 4
    %v422 = vmax.f32 %v420, %v421
    %v423 = vrot.slane %v422, 2
    %v424 = vmax.f32 %v422, %v423
    %v425 = vrot.slane %v424, 1
    %v426 = vmax.f32 %v424, %v425
    %v427 = vmax.f32 %v360, %v362
    %v428 = vmax.f32 %v427, %v364
    %v429 = vmax.f32 %v428, %v366
    %v430 = vrot.slane %v429, 4
    %v431 = vmax.f32 %v429, %v430
    %v432 = vrot.slane %v431, 2
    %v433 = vmax.f32 %v431, %v432
    %v434 = vrot.slane %v433, 1
    %v435 = vmax.f32 %v433, %v434
    %v436 = vmax.f32 %v361, %v363
    %v437 = vmax.f32 %v436, %v365
    %v438 = vmax.f32 %v437, %v367
    %v439 = vrot.slane %v438, 4
    %v440 = vmax.f32 %v438, %v439
    %v441 = vrot.slane %v440, 2
    %v442 = vmax.f32 %v440, %v441
    %v443 = vrot.slane %v442, 1
    %v444 = vmax.f32 %v442, %v443
    %v445 = vld [vmem:[#allocation5] sm:$0xff]
    %v446 = vld [vmem:[#allocation5 + $0x8] sm:$0xff]
    %v447 = vld [vmem:[#allocation5 + $0x10] sm:$0xff]
    %v448 = vld [vmem:[#allocation5 + $0x18] sm:$0xff]
    %v449 = vld [vmem:[#allocation5 + $0x20] sm:$0xff]
    %v450 = vld [vmem:[#allocation5 + $0x28] sm:$0xff]
    %v451 = vld [vmem:[#allocation5 + $0x30] sm:$0xff]
    %v452 = vld [vmem:[#allocation5 + $0x38] sm:$0xff]
    %v453 = vld [vmem:[#allocation5 + $0x40] sm:$0xff]
    %v454 = vld [vmem:[#allocation5 + $0x48] sm:$0xff]
    %v455 = vld [vmem:[#allocation5 + $0x50] sm:$0xff]
    %v456 = vld [vmem:[#allocation5 + $0x58] sm:$0xff]
    %v457 = vld [vmem:[#allocation5 + $0x60] sm:$0xff]
    %v458 = vld [vmem:[#allocation5 + $0x68] sm:$0xff]
    %v459 = vld [vmem:[#allocation5 + $0x70] sm:$0xff]
    %v460 = vld [vmem:[#allocation5 + $0x78] sm:$0xff]
    %v461 = vld [vmem:[#allocation5 + $0x80] sm:$0xff]
    %v462 = vld [vmem:[#allocation5 + $0x88] sm:$0xff]
    %v463 = vld [vmem:[#allocation5 + $0x90] sm:$0xff]
    %v464 = vld [vmem:[#allocation5 + $0x98] sm:$0xff]
    %v465 = vld [vmem:[#allocation5 + $0xa0] sm:$0xff]
    %v466 = vld [vmem:[#allocation5 + $0xa8] sm:$0xff]
    %v467 = vld [vmem:[#allocation5 + $0xb0] sm:$0xff]
    %v468 = vld [vmem:[#allocation5 + $0xb8] sm:$0xff]
    %v469 = vld [vmem:[#allocation5 + $0xc0] sm:$0xff]
    %v470 = vld [vmem:[#allocation5 + $0xc8] sm:$0xff]
    %v471 = vld [vmem:[#allocation5 + $0xd0] sm:$0xff]
    %v472 = vld [vmem:[#allocation5 + $0xd8] sm:$0xff]
    %v473 = vld [vmem:[#allocation5 + $0xe0] sm:$0xff]
    %v474 = vld [vmem:[#allocation5 + $0xe8] sm:$0xff]
    %v475 = vld [vmem:[#allocation5 + $0xf0] sm:$0xff]
    %v476 = vld [vmem:[#allocation5 + $0xf8] sm:$0xff]
    %v477 = vld [vmem:[#allocation5 + $0x100] sm:$0xff]
    %v478 = vld [vmem:[#allocation5 + $0x108] sm:$0xff]
    %v479 = vld [vmem:[#allocation5 + $0x110] sm:$0xff]
    %v480 = vld [vmem:[#allocation5 + $0x118] sm:$0xff]
    %v481 = vld [vmem:[#allocation5 + $0x120] sm:$0xff]
    %v482 = vld [vmem:[#allocation5 + $0x128] sm:$0xff]
    %v483 = vld [vmem:[#allocation5 + $0x130] sm:$0xff]
    %v484 = vld [vmem:[#allocation5 + $0x138] sm:$0xff]
    %v485 = vld [vmem:[#allocation5 + $0x140] sm:$0xff]
    %v486 = vld [vmem:[#allocation5 + $0x148] sm:$0xff]
    %v487 = vld [vmem:[#allocation5 + $0x150] sm:$0xff]
    %v488 = vld [vmem:[#allocation5 + $0x158] sm:$0xff]
    %v489 = vld [vmem:[#allocation5 + $0x160] sm:$0xff]
    %v490 = vld [vmem:[#allocation5 + $0x168] sm:$0xff]
    %v491 = vld [vmem:[#allocation5 + $0x170] sm:$0xff]
    %v492 = vld [vmem:[#allocation5 + $0x178] sm:$0xff]
    %v493 = vld [vmem:[#allocation5 + $0x180] sm:$0xff]
    %v494 = vld [vmem:[#allocation5 + $0x188] sm:$0xff]
    %v495 = vld [vmem:[#allocation5 + $0x190] sm:$0xff]
    %v496 = vld [vmem:[#allocation5 + $0x198] sm:$0xff]
    %v497 = vld [vmem:[#allocation5 + $0x1a0] sm:$0xff]
    %v498 = vld [vmem:[#allocation5 + $0x1a8] sm:$0xff]
    %v499 = vld [vmem:[#allocation5 + $0x1b0] sm:$0xff]
    %v500 = vld [vmem:[#allocation5 + $0x1b8] sm:$0xff]
    %v501 = vld [vmem:[#allocation5 + $0x1c0] sm:$0xff]
    %v502 = vld [vmem:[#allocation5 + $0x1c8] sm:$0xff]
    %v503 = vld [vmem:[#allocation5 + $0x1d0] sm:$0xff]
    %v504 = vld [vmem:[#allocation5 + $0x1d8] sm:$0xff]
    %v505 = vld [vmem:[#allocation5 + $0x1e0] sm:$0xff]
    %v506 = vld [vmem:[#allocation5 + $0x1e8] sm:$0xff]
    %v507 = vld [vmem:[#allocation5 + $0x1f0] sm:$0xff]
    %v508 = vld [vmem:[#allocation5 + $0x1f8] sm:$0xff]
    %s509 = scalar_lea.vmem [#allocation5], 512
    %v510 = vld [vmem:[%s509] sm:$0xff]
    %v511 = vld [vmem:[%s509 + $0x8] sm:$0xff]
    %v512 = vld [vmem:[%s509 + $0x10] sm:$0xff]
    %v513 = vld [vmem:[%s509 + $0x18] sm:$0xff]
    %v514 = vld [vmem:[%s509 + $0x20] sm:$0xff]
    %v515 = vld [vmem:[%s509 + $0x28] sm:$0xff]
    %v516 = vld [vmem:[%s509 + $0x30] sm:$0xff]
    %v517 = vld [vmem:[%s509 + $0x38] sm:$0xff]
    %v518 = vld [vmem:[%s509 + $0x40] sm:$0xff]
    %v519 = vld [vmem:[%s509 + $0x48] sm:$0xff]
    %v520 = vld [vmem:[%s509 + $0x50] sm:$0xff]
    %v521 = vld [vmem:[%s509 + $0x58] sm:$0xff]
    %v522 = vld [vmem:[%s509 + $0x60] sm:$0xff]
    %v523 = vld [vmem:[%s509 + $0x68] sm:$0xff]
    %v524 = vld [vmem:[%s509 + $0x70] sm:$0xff]
    %v525 = vld [vmem:[%s509 + $0x78] sm:$0xff]
    %v526 = vld [vmem:[%s509 + $0x80] sm:$0xff]
    %v527 = vld [vmem:[%s509 + $0x88] sm:$0xff]
    %v528 = vld [vmem:[%s509 + $0x90] sm:$0xff]
    %v529 = vld [vmem:[%s509 + $0x98] sm:$0xff]
    %v530 = vld [vmem:[%s509 + $0xa0] sm:$0xff]
    %v531 = vld [vmem:[%s509 + $0xa8] sm:$0xff]
    %v532 = vld [vmem:[%s509 + $0xb0] sm:$0xff]
    %v533 = vld [vmem:[%s509 + $0xb8] sm:$0xff]
    %v534 = vld [vmem:[%s509 + $0xc0] sm:$0xff]
    %v535 = vld [vmem:[%s509 + $0xc8] sm:$0xff]
    %v536 = vld [vmem:[%s509 + $0xd0] sm:$0xff]
    %v537 = vld [vmem:[%s509 + $0xd8] sm:$0xff]
    %v538 = vld [vmem:[%s509 + $0xe0] sm:$0xff]
    %v539 = vld [vmem:[%s509 + $0xe8] sm:$0xff]
    %v540 = vld [vmem:[%s509 + $0xf0] sm:$0xff]
    %v541 = vld [vmem:[%s509 + $0xf8] sm:$0xff]
    %v542 = vld [vmem:[%s509 + $0x100] sm:$0xff]
    %v543 = vld [vmem:[%s509 + $0x108] sm:$0xff]
    %v544 = vld [vmem:[%s509 + $0x110] sm:$0xff]
    %v545 = vld [vmem:[%s509 + $0x118] sm:$0xff]
    %v546 = vld [vmem:[%s509 + $0x120] sm:$0xff]
    %v547 = vld [vmem:[%s509 + $0x128] sm:$0xff]
    %v548 = vld [vmem:[%s509 + $0x130] sm:$0xff]
    %v549 = vld [vmem:[%s509 + $0x138] sm:$0xff]
    %v550 = vld [vmem:[%s509 + $0x140] sm:$0xff]
    %v551 = vld [vmem:[%s509 + $0x148] sm:$0xff]
    %v552 = vld [vmem:[%s509 + $0x150] sm:$0xff]
    %v553 = vld [vmem:[%s509 + $0x158] sm:$0xff]
    %v554 = vld [vmem:[%s509 + $0x160] sm:$0xff]
    %v555 = vld [vmem:[%s509 + $0x168] sm:$0xff]
    %v556 = vld [vmem:[%s509 + $0x170] sm:$0xff]
    %v557 = vld [vmem:[%s509 + $0x178] sm:$0xff]
    %v558 = vld [vmem:[%s509 + $0x180] sm:$0xff]
    %v559 = vld [vmem:[%s509 + $0x188] sm:$0xff]
    %v560 = vld [vmem:[%s509 + $0x190] sm:$0xff]
    %v561 = vld [vmem:[%s509 + $0x198] sm:$0xff]
    %v562 = vld [vmem:[%s509 + $0x1a0] sm:$0xff]
    %v563 = vld [vmem:[%s509 + $0x1a8] sm:$0xff]
    %v564 = vld [vmem:[%s509 + $0x1b0] sm:$0xff]
    %v565 = vld [vmem:[%s509 + $0x1b8] sm:$0xff]
    %v566 = vld [vmem:[%s509 + $0x1c0] sm:$0xff]
    %v567 = vld [vmem:[%s509 + $0x1c8] sm:$0xff]
    %v568 = vld [vmem:[%s509 + $0x1d0] sm:$0xff]
    %v569 = vld [vmem:[%s509 + $0x1d8] sm:$0xff]
    %v570 = vld [vmem:[%s509 + $0x1e0] sm:$0xff]
    %v571 = vld [vmem:[%s509 + $0x1e8] sm:$0xff]
    %v572 = vld [vmem:[%s509 + $0x1f0] sm:$0xff]
    %v573 = vld [vmem:[%s509 + $0x1f8] sm:$0xff]
    %v578 = vsel %vm153, %v435, %v417
    %v579 = vsel %vm153, %v444, %v426
    %582 = vmatprep.subr.mxu0 %v541
    %583 = vmatpush1.msra.mxu0 %v540
    %584 = vmatprep.subr.mxu0 %v539
    %585 = vmatpush1.msra.mxu0 %v538
    %586 = vmatprep.subr.mxu0 %v537
    %587 = vmatpush1.msra.mxu0 %v536
    %588 = vmatprep.subr.mxu0 %v535
    %589 = vmatpush1.msra.mxu0 %v534
    %590 = vmatprep.subr.mxu0 %v533
    %591 = vmatpush1.msra.mxu0 %v532
    %592 = vmatprep.subr.mxu0 %v531
    %593 = vmatpush1.msra.mxu0 %v530
    %594 = vmatprep.subr.mxu0 %v529
    %595 = vmatpush1.msra.mxu0 %v528
    %596 = vmatprep.subr.mxu0 %v527
    %597 = vmatpush1.msra.mxu0 %v526
    %598 = vmatprep.subr.mxu0 %v525
    %599 = vmatpush1.msra.mxu0 %v524
    %600 = vmatprep.subr.mxu0 %v523
    %601 = vmatpush1.msra.mxu0 %v522
    %602 = vmatprep.subr.mxu0 %v521
    %603 = vmatpush1.msra.mxu0 %v520
    %604 = vmatprep.subr.mxu0 %v519
    %605 = vmatpush1.msra.mxu0 %v518
    %606 = vmatprep.subr.mxu0 %v517
    %607 = vmatpush1.msra.mxu0 %v516
    %608 = vmatprep.subr.mxu0 %v515
    %609 = vmatpush1.msra.mxu0 %v514
    %610 = vmatprep.subr.mxu0 %v513
    %611 = vmatpush1.msra.mxu0 %v512
    %612 = vmatprep.subr.mxu0 %v511
    %613 = vmatpush1.msra.mxu0 %v510
    %614 = vmatprep.subr.mxu0 %v573
    %615 = vmatpush2.msra.mxu0 %v572
    %616 = vmatprep.subr.mxu0 %v571
    %617 = vmatpush2.msra.mxu0 %v570
    %618 = vmatprep.subr.mxu0 %v569
    %619 = vmatpush2.msra.mxu0 %v568
    %620 = vmatprep.subr.mxu0 %v567
    %621 = vmatpush2.msra.mxu0 %v566
    %622 = vmatprep.subr.mxu0 %v565
    %623 = vmatpush2.msra.mxu0 %v564
    %624 = vmatprep.subr.mxu0 %v563
    %625 = vmatpush2.msra.mxu0 %v562
    %626 = vmatprep.subr.mxu0 %v561
    %627 = vmatpush2.msra.mxu0 %v560
    %628 = vmatprep.subr.mxu0 %v559
    %629 = vmatpush2.msra.mxu0 %v558
    %630 = vmatprep.subr.mxu0 %v557
    %631 = vmatpush2.msra.mxu0 %v556
    %632 = vmatprep.subr.mxu0 %v555
    %633 = vmatpush2.msra.mxu0 %v554
    %634 = vmatprep.subr.mxu0 %v553
    %635 = vmatpush2.msra.mxu0 %v552
    %636 = vmatprep.subr.mxu0 %v551
    %637 = vmatpush2.msra.mxu0 %v550
    %638 = vmatprep.subr.mxu0 %v549
    %639 = vmatpush2.msra.mxu0 %v548
    %640 = vmatprep.subr.mxu0 %v547
    %641 = vmatpush2.msra.mxu0 %v546
    %642 = vmatprep.subr.mxu0 %v545
    %643 = vmatpush2.msra.mxu0 %v544
    %644 = vmatprep.subr.mxu0 %v543
    %645 = vmatpush2.msra.mxu0 %v542
    %646 = vmatprep.mubr.f32.mxu0 %v579
    %647 = vmatmul.mubr.f32.gmra.mxu0 %v578
    %v648 = vpop.f32.mrf.mxu0
    %v649 = vadd.f32 0.0, %v648
    %v650 = vpop.f32.mrf.mxu0
    %v651 = vadd.f32 0.0, %v650
    %652 = vdwg.mxu0
    %v657 = vsel %vm153, %v407, %v405
    %v658 = vsel %vm153, %v408, %v406
    %661 = vmatprep.subr.mxu0 %v476
    %662 = vmatpush1.msra.mxu0 %v475
    %663 = vmatprep.subr.mxu0 %v474
    %664 = vmatpush1.msra.mxu0 %v473
    %665 = vmatprep.subr.mxu0 %v472
    %666 = vmatpush1.msra.mxu0 %v471
    %667 = vmatprep.subr.mxu0 %v470
    %668 = vmatpush1.msra.mxu0 %v469
    %669 = vmatprep.subr.mxu0 %v468
    %670 = vmatpush1.msra.mxu0 %v467
    %671 = vmatprep.subr.mxu0 %v466
    %672 = vmatpush1.msra.mxu0 %v465
    %673 = vmatprep.subr.mxu0 %v464
    %674 = vmatpush1.msra.mxu0 %v463
    %675 = vmatprep.subr.mxu0 %v462
    %676 = vmatpush1.msra.mxu0 %v461
    %677 = vmatprep.subr.mxu0 %v460
    %678 = vmatpush1.msra.mxu0 %v459
    %679 = vmatprep.subr.mxu0 %v458
    %680 = vmatpush1.msra.mxu0 %v457
    %681 = vmatprep.subr.mxu0 %v456
    %682 = vmatpush1.msra.mxu0 %v455
    %683 = vmatprep.subr.mxu0 %v454
    %684 = vmatpush1.msra.mxu0 %v453
    %685 = vmatprep.subr.mxu0 %v452
    %686 = vmatpush1.msra.mxu0 %v451
    %687 = vmatprep.subr.mxu0 %v450
    %688 = vmatpush1.msra.mxu0 %v449
    %689 = vmatprep.subr.mxu0 %v448
    %690 = vmatpush1.msra.mxu0 %v447
    %691 = vmatprep.subr.mxu0 %v446
    %692 = vmatpush1.msra.mxu0 %v445
    %693 = vmatprep.subr.mxu0 %v508
    %694 = vmatpush2.msra.mxu0 %v507
    %695 = vmatprep.subr.mxu0 %v506
    %696 = vmatpush2.msra.mxu0 %v505
    %697 = vmatprep.subr.mxu0 %v504
    %698 = vmatpush2.msra.mxu0 %v503
    %699 = vmatprep.subr.mxu0 %v502
    %700 = vmatpush2.msra.mxu0 %v501
    %701 = vmatprep.subr.mxu0 %v500
    %702 = vmatpush2.msra.mxu0 %v499
    %703 = vmatprep.subr.mxu0 %v498
    %704 = vmatpush2.msra.mxu0 %v497
    %705 = vmatprep.subr.mxu0 %v496
    %706 = vmatpush2.msra.mxu0 %v495
    %707 = vmatprep.subr.mxu0 %v494
    %708 = vmatpush2.msra.mxu0 %v493
    %709 = vmatprep.subr.mxu0 %v492
    %710 = vmatpush2.msra.mxu0 %v491
    %711 = vmatprep.subr.mxu0 %v490
    %712 = vmatpush2.msra.mxu0 %v489
    %713 = vmatprep.subr.mxu0 %v488
    %714 = vmatpush2.msra.mxu0 %v487
    %715 = vmatprep.subr.mxu0 %v486
    %716 = vmatpush2.msra.mxu0 %v485
    %717 = vmatprep.subr.mxu0 %v484
    %718 = vmatpush2.msra.mxu0 %v483
    %719 = vmatprep.subr.mxu0 %v482
    %720 = vmatpush2.msra.mxu0 %v481
    %721 = vmatprep.subr.mxu0 %v480
    %722 = vmatpush2.msra.mxu0 %v479
    %723 = vmatprep.subr.mxu0 %v478
    %724 = vmatpush2.msra.mxu0 %v477
    %725 = vmatprep.mubr.f32.mxu0 %v658
    %726 = vmatmul.mubr.f32.gmra.mxu0 %v657
    %v727 = vpop.f32.mrf.mxu0
    %v728 = vadd.f32 %v649, %v727
    %v729 = vpop.f32.mrf.mxu0
    %v730 = vadd.f32 %v651, %v729
    %731 = vdwg.mxu0
    %v732 = vxor.u32 %v728, 2147483648
    %v733 = vxor.u32 %v730, 2147483648
    %v734 = vmul.f32 %v732, 1.442695
    %v735 = vpow.pop %v734
    %v736 = vmul.f32 %v733, 1.442695
    %v737 = vpow.pop %v736
    %v738 = vadd.f32 %v735, 1.0
    %v739 = vadd.f32 %v737, 1.0
    %v740 = vrcp.pop %v738
    %v741 = vmul.f32 1.0, %v740
    %v742 = vrcp.pop %v739
    %v743 = vmul.f32 1.0, %v742
    %v746 = vcombine.low %v741, %v743
    %v748 = vunpack.c.l.s4 1966171168
    %v749 = vunpack.c.0.s8 %v748
    %v750 = vlaneseq
    %v751 = vshrl.u32 %v750, 7
    %v752 = vsub.s32 %v749, %v751
    %v753 = vrot.slane %v746, %v752
    %v754 = vcombine.high %v753, %v753
    %v756 = vunpack.c.l.s4 1966171168
    %v757 = vunpack.c.0.s8 %v756
    %v758 = vlaneseq
    %v759 = vshrl.u32 %v758, 7
    %v760 = vsub.s32 %v757, %v759
    %v761 = vrot.slane %v753, %v760
    %v763 = vunpack.c.l.s4 1966171168
    %v764 = vunpack.c.0.s8 %v763
    %v765 = vlaneseq
    %v766 = vshrl.u32 %v765, 7
    %v767 = vsub.s32 %v764, %v766
    %v768 = vrot.slane %v754, %v767
    %v769 = vlaneseq
    %v770 = vshrl.u32 %v769, 7
    %v771 = vsub.s32 0, %v770
    %v772 = vrot.slane %v761, %v771
    %v773 = vlaneseq
    %v774 = vshrl.u32 %v773, 7
    %v775 = vsub.s32 1, %v774
    %v776 = vrot.slane %v761, %v775
    %v777 = vlaneseq
    %v778 = vshrl.u32 %v777, 7
    %v779 = vsub.s32 0, %v778
    %v780 = vrot.slane %v768, %v779
    %v781 = vlaneseq
    %v782 = vshrl.u32 %v781, 7
    %v783 = vsub.s32 1, %v782
    %v784 = vrot.slane %v768, %v783
    %v789 = vmul.f32 %v352, %v772
    %v790 = vmul.f32 %v353, %v776
    %v791 = vmul.f32 %v354, %v772
    %v792 = vmul.f32 %v355, %v776
    %v793 = vmul.f32 %v356, %v772
    %v794 = vmul.f32 %v357, %v776
    %v795 = vmul.f32 %v358, %v772
    %v796 = vmul.f32 %v359, %v776
    %v797 = vmul.f32 %v360, %v780
    %v798 = vmul.f32 %v361, %v784
    %v799 = vmul.f32 %v362, %v780
    %v800 = vmul.f32 %v363, %v784
    %v801 = vmul.f32 %v364, %v780
    %v802 = vmul.f32 %v365, %v784
    %v803 = vmul.f32 %v366, %v780
    %v804 = vmul.f32 %v367, %v784
    %805 = vst [vmem:[#allocation7] sm:$0xff] %v789
    %806 = vst [vmem:[#allocation7 + $0x8] sm:$0xff] %v790
    %807 = vst [vmem:[#allocation7 + $0x10] sm:$0xff] %v791
    %808 = vst [vmem:[#allocation7 + $0x18] sm:$0xff] %v792
    %809 = vst [vmem:[#allocation7 + $0x20] sm:$0xff] %v793
    %810 = vst [vmem:[#allocation7 + $0x28] sm:$0xff] %v794
    %811 = vst [vmem:[#allocation7 + $0x30] sm:$0xff] %v795
    %812 = vst [vmem:[#allocation7 + $0x38] sm:$0xff] %v796
    %813 = vst [vmem:[#allocation7 + $0x40] sm:$0xff] %v797
    %814 = vst [vmem:[#allocation7 + $0x48] sm:$0xff] %v798
    %815 = vst [vmem:[#allocation7 + $0x50] sm:$0xff] %v799
    %816 = vst [vmem:[#allocation7 + $0x58] sm:$0xff] %v800
    %817 = vst [vmem:[#allocation7 + $0x60] sm:$0xff] %v801
    %818 = vst [vmem:[#allocation7 + $0x68] sm:$0xff] %v802
    %819 = vst [vmem:[#allocation7 + $0x70] sm:$0xff] %v803
    %820 = vst [vmem:[#allocation7 + $0x78] sm:$0xff] %v804
    // Predicated region
    $region26: #{tpu_custom_call.1} parent=1 // pred_check
      _
    $region27: #{tpu_custom_call.1} parent=1 // pred_check_branch
      %822 = sbr.rel (0) target = $region29
    $region28: #{tpu_custom_call.1} parent=1 // pred_region
      %s824 = ssub.s32 2048, 2048
      %825 = vsyncadd [#allocation4], %s824
      %s826 = sshll.u32 [#allocation7], 4
      %s827 = int_to_ptr.vmem [resolvable:$true] %s826
      %832 = dma.vmem_to_hbm [thread:$0]  %s827, 2048, %s4, [#allocation4], 256, 256, 16
    $region29: #{tpu_custom_call.1} parent=1 // pred_fallthru
      _
    // Predicated region
    $region30: #{tpu_custom_call.1} parent=1 // pred_check
      _
    $region31: #{tpu_custom_call.1} parent=1 // pred_check_branch
      %834 = sbr.rel (0) target = $region33
    $region32: #{tpu_custom_call.1} parent=1 // pred_region
      %835 = dma.done [#allocation4], 2048
    $region33: #{tpu_custom_call.1} parent=1 // pred_fallthru
      _
    %836 = vsyncpa [#allocation3], 1
    %837 = vsyncpa [#allocation6], 1
    %838 = vsyncpa [#allocation4], 1

</llo_original>
